<compile_context>
chip_gen: v7x
topology: tpu7x:2x2x1
jax: 0.10.0
libtpu: 0.0.40
codegen_flags: <defaults>
</compile_context>

<pallas_src>
import functools
import math

import jax
import jax.numpy as jnp
from jax.experimental import pallas as pl
from jax.experimental.pallas import tpu as pltpu

BN_EPS = 1e-5
LANE = 128          # TPU lane width; every hidden width (32/64/16/A) is padded to this.
VMEM_LIMIT = 48 * 1024 * 1024   # fits v7x's 64 MiB/TC, ample headroom on v5e/v6e.


def _layer_dims(state_size, action_size):
    # (fan_in, fan_out) for fc0..fc4 of the DeepQNetwork MLP.
    return [(state_size, 32), (32, 64), (64, 64), (64, 16), (16, action_size)]


def _round_up(n, m):
    return ((n + m - 1) // m) * m


# ----------------------------------------------------------------------------- kernels
def _mlp_matmuls(x, params_ref, bias_ref, out_ref):
    """Shared (Linear+ReLU)x4 -> Linear+tanh body on one batch tile.

    x         : [TB, KP] activations (KP = lane/sublane-padded state size)
    params_ref: [5*128, 128] zero-padded weight slab in compute dtype
    bias_ref  : [8, 128] f32 bias tail (rows 0..4 = b0..b4, lane-padded with zeros)
    out_ref   : [TB, 128] f32 lane-dense output (cols >= action_size are tanh(0)=0)
    """
    kp = x.shape[1]
    cdt = params_ref.dtype

    w0 = params_ref[0 * LANE:0 * LANE + kp, :]     # [KP,  128] (rows >= S and cols >= 32 zero)
    w1 = params_ref[1 * LANE:2 * LANE, :]          # [128, 128] (real 32x64)
    w2 = params_ref[2 * LANE:3 * LANE, :]          # [128, 128] (real 64x64)
    w3 = params_ref[3 * LANE:4 * LANE, :]          # [128, 128] (real 64x16)
    w4 = params_ref[4 * LANE:5 * LANE, :]          # [128, 128] (real 16xA)
    b0 = bias_ref[0:1, :]
    b1 = bias_ref[1:2, :]
    b2 = bias_ref[2:3, :]
    b3 = bias_ref[3:4, :]
    b4 = bias_ref[4:5, :]

    def mm(a, w):
        # MXU matmul; operands in the slab's compute dtype, f32 accumulation.
        return jnp.dot(a.astype(cdt), w, preferred_element_type=jnp.float32)

    h = jnp.maximum(mm(x, w0) + b0, 0.0)           # [TB,128] lanes >=32 stay 0
    h = jnp.maximum(mm(h, w1) + b1, 0.0)           #           lanes >=64 stay 0
    h = jnp.maximum(mm(h, w2) + b2, 0.0)
    h = jnp.maximum(mm(h, w3) + b3, 0.0)           #           lanes >=16 stay 0
    out_ref[...] = jnp.tanh(mm(h, w4) + b4).astype(out_ref.dtype)


def _dqn_tile_kernel(params_ref, bias_ref, x_ref, out_ref):
    """Multi-tile path: BatchNorm already folded into layer 0 by the wrapper."""
    _mlp_matmuls(x_ref[...], params_ref, bias_ref, out_ref)


def _dqn_bn_kernel(bn_ref, params_ref, bias_ref, x_ref, out_ref):
    """Single-tile path (grid=(1,)): full-batch BatchNorm computed in-kernel."""
    x = x_ref[...].astype(jnp.float32)                               # [B, KP]
    mean = jnp.mean(x, axis=0, keepdims=True)
    var = jnp.mean(jnp.square(x - mean), axis=0, keepdims=True)      # biased variance
    rstd = jax.lax.rsqrt(var + BN_EPS)
    gamma = bn_ref[0:1, :]                                           # padded cols are 0
    beta = bn_ref[1:2, :]
    xn = (x - mean) * (rstd * gamma) + beta                          # padded cols stay 0
    _mlp_matmuls(xn, params_ref, bias_ref, out_ref)


# ----------------------------------------------------------------------------- packing
def _pack_weights(ws, dims, dtype):
    """Pack w0..w4 into one zero-padded [5*128, 128] slab (one DMA, static carving)."""
    slab = jnp.zeros((5 * LANE, LANE), jnp.float32)
    for i, (fi, fo) in enumerate(dims):
        slab = slab.at[i * LANE:i * LANE + fi, :fo].set(ws[i])
    return slab.astype(dtype)


def _pack_biases(bs, dims):
    """Pack b0..b4 into a [8, 128] f32 tail (biases stay f32 even on the bf16 path)."""
    tail = jnp.zeros((8, LANE), jnp.float32)
    for i, (_, fo) in enumerate(dims):
        tail = tail.at[i, :fo].set(bs[i].reshape(-1))
    return tail


# ----------------------------------------------------------------------------- wrapper
@functools.partial(jax.jit, static_argnames=("action_size", "block_b", "compute_dtype"))
def deep_q_network_forward(x, params, *, action_size, block_b=4096,
                           compute_dtype=jnp.bfloat16):
    B, S = x.shape
    assert S <= LANE, "state_size must fit in one 128-lane tile"
    kp = _round_up(max(S, 16), 16)    # pad K to a multiple of 16 (bf16 sublane pack)
    x32 = x.astype(jnp.float32)
    dims = _layer_dims(S, action_size)
    itemsize = jnp.dtype(compute_dtype).itemsize

    def cost(batch):
        # Padded MXU FLOPs actually executed (not the logical unpadded FLOPs).
        flops = 2 * batch * (kp * LANE + 4 * LANE * LANE)
        return pl.CostEstimate(
            flops=flops,
            transcendentals=batch * LANE,
            bytes_accessed=(batch * kp * itemsize + batch * LANE * 4
                            + 5 * LANE * LANE * itemsize + 8 * LANE * 4))

    cparams = pltpu.CompilerParams(
        dimension_semantics=("parallel",),        # megacore sharding on v7x
        vmem_limit_bytes=VMEM_LIMIT)

    if B <= block_b:
        # -------- small-batch fast path: one tile, BN computed inside the kernel ----
        slab = _pack_weights([params[f"w{i}"] for i in range(5)], dims, compute_dtype)
        bias = _pack_biases([params[f"b{i}"] for i in range(5)], dims)
        bn = jnp.zeros((2, kp), jnp.float32)
        bn = bn.at[0, :S].set(params["gamma"].reshape(-1))
        bn = bn.at[1, :S].set(params["beta"].reshape(-1))
        xp = jnp.pad(x32, ((0, 0), (0, kp - S)))                     # f32 for BN stats

        out_padded = pl.pallas_call(
            _dqn_bn_kernel,
            out_shape=jax.ShapeDtypeStruct((B, LANE), jnp.float32),
            grid=(1,),
            in_specs=[
                pl.BlockSpec((2, kp), lambda i: (0, 0)),             # gamma/beta
                pl.BlockSpec(slab.shape, lambda i: (0, 0)),          # weight slab
                pl.BlockSpec((8, LANE), lambda i: (0, 0)),           # f32 biases
                pl.BlockSpec((B, kp), lambda i: (0, 0)),             # whole batch
            ],
            out_specs=pl.BlockSpec((B, LANE), lambda i: (0, 0)),
            compiler_params=cparams,
            cost_estimate=cost(B),
        )(bn, slab, bias, xp)
        return out_padded[:, :action_size]

    # -------- multi-tile path: full-batch BN stats folded into layer 0 --------------
    mean = jnp.mean(x32, axis=0, keepdims=True)
    var = jnp.mean(jnp.square(x32 - mean), axis=0, keepdims=True)    # biased variance
    rstd = jax.lax.rsqrt(var + BN_EPS)
    scale = params["gamma"].reshape(1, S) * rstd                     # [1, S]
    shift = params["beta"].reshape(1, S) - mean * scale              # [1, S]
    w0_fold = params["w0"] * scale.reshape(S, 1)                     # [S, 32]
    b0_fold = shift @ params["w0"] + params["b0"].reshape(1, -1)     # [1, 32]

    slab = _pack_weights([w0_fold] + [params[f"w{i}"] for i in range(1, 5)],
                         dims, compute_dtype)
    bias = _pack_biases([b0_fold] + [params[f"b{i}"] for i in range(1, 5)], dims)
    xp = jnp.pad(x32, ((0, 0), (0, kp - S))).astype(compute_dtype)   # bf16 x stream

    tb = _round_up(min(block_b, B), 8)
    ntiles = pl.cdiv(B, tb)
    if ntiles > 1 and ntiles % 2 == 1:
        # Round the grid length up to even so v7x's 2 TensorCores stay balanced.
        ntiles += 1
        tb = _round_up(pl.cdiv(B, ntiles), 8)
    grid = (pl.cdiv(B, tb),)

    out_padded = pl.pallas_call(
        _dqn_tile_kernel,
        out_shape=jax.ShapeDtypeStruct((B, LANE), jnp.float32),
        grid=grid,
        in_specs=[
            pl.BlockSpec(slab.shape, lambda i: (0, 0)),              # weight slab (invariant)
            pl.BlockSpec((8, LANE), lambda i: (0, 0)),               # f32 biases  (invariant)
            pl.BlockSpec((tb, kp), lambda i: (i, 0)),                # x batch tile
        ],
        out_specs=pl.BlockSpec((tb, LANE), lambda i: (i, 0)),        # lane-dense writeback
        compiler_params=cparams,
        cost_estimate=cost(B),
    )(slab, bias, xp)
    # Partial last tile relies on Pallas masked writeback (garbage OOB rows discarded).
    return out_padded[:, :action_size]


# ----------------------------------------------------------------------------- helpers
def init_params(key, state_size, action_size):
    """Deterministic params mimicking PyTorch nn.Linear default init
    (uniform(-1/sqrt(fan_in), 1/sqrt(fan_in))); BN gamma=1, beta=0.
    Weights stored pre-transposed as [in_features, out_features]."""
    dims = _layer_dims(state_size, action_size)
    params = {
        "gamma": jnp.ones((1, state_size), jnp.float32),
        "beta": jnp.zeros((1, state_size), jnp.float32),
    }
    keys = jax.random.split(key, 2 * len(dims))
    for i, (fan_in, fan_out) in enumerate(dims):
        bound = 1.0 / math.sqrt(fan_in)
        params[f"w{i}"] = jax.random.uniform(keys[2 * i], (fan_in, fan_out),
                                             jnp.float32, minval=-bound, maxval=bound)
        params[f"b{i}"] = jax.random.uniform(keys[2 * i + 1], (1, fan_out),
                                             jnp.float32, minval=-bound, maxval=bound)
    return params


def reference_forward(x, params):
    """Plain-JAX reference of the same forward pass (for sanity checking)."""
    mean = jnp.mean(x, axis=0, keepdims=True)
    var = jnp.mean((x - mean) ** 2, axis=0, keepdims=True)
    h = (x - mean) / jnp.sqrt(var + BN_EPS) * params["gamma"] + params["beta"]
    for i in range(4):
        h = jnp.maximum(h @ params[f"w{i}"] + params[f"b{i}"], 0.0)
    return jnp.tanh(h @ params["w4"] + params["b4"])


# TODO(synk): bn2..bn5 / drop1 / drop2 exist in __init__ but are never used in
# forward(); BatchNorm running-stat updates are a training side effect that does
# not affect the forward output, so neither is implemented here.

if __name__ == "__main__":
    state_size, action_size = 8, 4
    key = jax.random.PRNGKey(0)
    k_p, k1, k2 = jax.random.split(key, 3)
    params = init_params(k_p, state_size, action_size)

    # Small-batch single-tile fast path (grid=(1,), BN computed in-kernel), f32.
    x_small = jax.random.normal(k1, (64, state_size), dtype=jnp.float32)
    out_s = jax.block_until_ready(deep_q_network_forward(
        x_small, params, action_size=action_size, compute_dtype=jnp.float32))
    ref_s = reference_forward(x_small, params)
    assert out_s.shape == (64, action_size)
    assert jnp.allclose(out_s, ref_s, atol=1e-4, rtol=1e-4), "single-tile f32 mismatch"

    # Multi-tile path (even grid, partial last tile, BN folded into layer 0), f32.
    x_big = jax.random.normal(k2, (200, state_size), dtype=jnp.float32)
    out_b = jax.block_until_ready(deep_q_network_forward(
        x_big, params, action_size=action_size, block_b=64, compute_dtype=jnp.float32))
    ref_b = reference_forward(x_big, params)
    assert out_b.shape == (200, action_size)
    assert jnp.allclose(out_b, ref_b, atol=1e-4, rtol=1e-4), "multi-tile f32 mismatch"

    # Default bf16 fast path (v6e/v7x MXU-native operands, f32 accumulation + f32 biases).
    out_bf = jax.block_until_ready(deep_q_network_forward(
        x_big, params, action_size=action_size, block_b=64))
    assert jnp.all(jnp.isfinite(out_bf))
    assert jnp.allclose(out_bf, ref_b, atol=5e-2, rtol=0.0), "multi-tile bf16 mismatch"

    out_sbf = jax.block_until_ready(deep_q_network_forward(
        x_small, params, action_size=action_size))
    assert jnp.allclose(out_sbf, ref_s, atol=5e-2, rtol=0.0), "single-tile bf16 mismatch"

    print("KERNEL_OK")
</pallas_src>

<mosaic_0001>
module attributes {stable_mosaic.version = 11 : i64} {
  func.func @_dqn_bn_kernel(%arg0: i32, %arg1: memref<2x16xf32, #tpu.memory_space<vmem>>, %arg2: memref<640x128xf32, #tpu.memory_space<vmem>>, %arg3: memref<8x128xf32, #tpu.memory_space<vmem>>, %arg4: memref<64x16xf32, #tpu.memory_space<vmem>>, %arg5: memref<64x128xf32, #tpu.memory_space<vmem>>) attributes {dimension_semantics = [#tpu.dimension_semantics<parallel>], iteration_bounds = array<i64: 1>, scalar_prefetch = 0 : i64, scratch_operands = 0 : i64, tpu.core_type = #tpu.core_type<tc>, window_params = [{pipeline_mode = #tpu.pipeline_mode<synchronous>, transform_indices = @transform_0, window_bounds = array<i64: 2, 16>}, {pipeline_mode = #tpu.pipeline_mode<synchronous>, transform_indices = @transform_1, window_bounds = array<i64: 640, 128>}, {pipeline_mode = #tpu.pipeline_mode<synchronous>, transform_indices = @transform_2, window_bounds = array<i64: 8, 128>}, {pipeline_mode = #tpu.pipeline_mode<synchronous>, transform_indices = @transform_3, window_bounds = array<i64: 64, 16>}, {pipeline_mode = #tpu.pipeline_mode<synchronous>, transform_indices = @transform_4, window_bounds = array<i64: 64, 128>}]} {
    %c0 = arith.constant 0 : index
    %c0_0 = arith.constant 0 : index
    %0 = vector.load %arg4[%c0, %c0_0] : memref<64x16xf32, #tpu.memory_space<vmem>>, vector<64x16xf32>
    %cst = arith.constant dense<0.000000e+00> : vector<16xf32>
    %1 = vector.multi_reduction <add>, %0, %cst [0] : vector<64x16xf32> to vector<16xf32>
    %2 = vector.shape_cast %1 : vector<16xf32> to vector<1x16xf32>
    %cst_1 = arith.constant 6.400000e+01 : f32
    %3 = vector.broadcast %cst_1 : f32 to vector<1x16xf32>
    %4 = arith.divf %2, %3 : vector<1x16xf32>
    %5 = vector.broadcast %4 : vector<1x16xf32> to vector<64x16xf32>
    %6 = arith.subf %0, %5 : vector<64x16xf32>
    %7 = arith.mulf %6, %6 : vector<64x16xf32>
    %cst_2 = arith.constant dense<0.000000e+00> : vector<16xf32>
    %8 = vector.multi_reduction <add>, %7, %cst_2 [0] : vector<64x16xf32> to vector<16xf32>
    %9 = vector.shape_cast %8 : vector<16xf32> to vector<1x16xf32>
    %cst_3 = arith.constant 6.400000e+01 : f32
    %10 = vector.broadcast %cst_3 : f32 to vector<1x16xf32>
    %11 = arith.divf %9, %10 : vector<1x16xf32>
    %cst_4 = arith.constant 9.99999974E-6 : f32
    %12 = vector.broadcast %cst_4 : f32 to vector<1x16xf32>
    %13 = arith.addf %11, %12 : vector<1x16xf32>
    %14 = math.rsqrt %13 : vector<1x16xf32>
    %c0_5 = arith.constant 0 : index
    %c0_6 = arith.constant 0 : index
    %15 = vector.load %arg1[%c0_5, %c0_6] : memref<2x16xf32, #tpu.memory_space<vmem>>, vector<1x16xf32>
    %c1 = arith.constant 1 : index
    %c0_7 = arith.constant 0 : index
    %16 = vector.load %arg1[%c1, %c0_7] : memref<2x16xf32, #tpu.memory_space<vmem>>, vector<1x16xf32>
    %17 = vector.broadcast %4 : vector<1x16xf32> to vector<64x16xf32>
    %18 = arith.subf %0, %17 : vector<64x16xf32>
    %19 = arith.mulf %14, %15 : vector<1x16xf32>
    %20 = vector.broadcast %19 : vector<1x16xf32> to vector<64x16xf32>
    %21 = arith.mulf %18, %20 : vector<64x16xf32>
    %22 = vector.broadcast %16 : vector<1x16xf32> to vector<64x16xf32>
    %23 = arith.addf %21, %22 : vector<64x16xf32>
    %c0_8 = arith.constant 0 : index
    %c0_9 = arith.constant 0 : index
    %24 = vector.load %arg2[%c0_8, %c0_9] : memref<640x128xf32, #tpu.memory_space<vmem>>, vector<16x128xf32>
    %c128 = arith.constant 128 : index
    %c0_10 = arith.constant 0 : index
    %25 = vector.load %arg2[%c128, %c0_10] : memref<640x128xf32, #tpu.memory_space<vmem>>, vector<128x128xf32>
    %c256 = arith.constant 256 : index
    %c0_11 = arith.constant 0 : index
    %26 = vector.load %arg2[%c256, %c0_11] : memref<640x128xf32, #tpu.memory_space<vmem>>, vector<128x128xf32>
    %c384 = arith.constant 384 : index
    %c0_12 = arith.constant 0 : index
    %27 = vector.load %arg2[%c384, %c0_12] : memref<640x128xf32, #tpu.memory_space<vmem>>, vector<128x128xf32>
    %c512 = arith.constant 512 : index
    %c0_13 = arith.constant 0 : index
    %28 = vector.load %arg2[%c512, %c0_13] : memref<640x128xf32, #tpu.memory_space<vmem>>, vector<128x128xf32>
    %c0_14 = arith.constant 0 : index
    %c0_15 = arith.constant 0 : index
    %29 = vector.load %arg3[%c0_14, %c0_15] : memref<8x128xf32, #tpu.memory_space<vmem>>, vector<1x128xf32>
    %c1_16 = arith.constant 1 : index
    %c0_17 = arith.constant 0 : index
    %30 = vector.load %arg3[%c1_16, %c0_17] : memref<8x128xf32, #tpu.memory_space<vmem>>, vector<1x128xf32>
    %c2 = arith.constant 2 : index
    %c0_18 = arith.constant 0 : index
    %31 = vector.load %arg3[%c2, %c0_18] : memref<8x128xf32, #tpu.memory_space<vmem>>, vector<1x128xf32>
    %c3 = arith.constant 3 : index
    %c0_19 = arith.constant 0 : index
    %32 = vector.load %arg3[%c3, %c0_19] : memref<8x128xf32, #tpu.memory_space<vmem>>, vector<1x128xf32>
    %c4 = arith.constant 4 : index
    %c0_20 = arith.constant 0 : index
    %33 = vector.load %arg3[%c4, %c0_20] : memref<8x128xf32, #tpu.memory_space<vmem>>, vector<1x128xf32>
    %cst_21 = arith.constant dense<0.000000e+00> : vector<64x128xf32>
    %34 = tpu.matmul %23, %24, %cst_21 {dimension_numbers = #tpu.dot_dimension_numbers<[1], [0], [0], [1], [0, 0, 1, 1], [], []>} : vector<64x16xf32>, vector<16x128xf32>, vector<64x128xf32> -> vector<64x128xf32>
    %35 = vector.broadcast %29 : vector<1x128xf32> to vector<64x128xf32>
    %36 = arith.addf %34, %35 : vector<64x128xf32>
    %cst_22 = arith.constant 0.000000e+00 : f32
    %37 = vector.broadcast %cst_22 : f32 to vector<64x128xf32>
    %38 = arith.maximumf %36, %37 : vector<64x128xf32>
    %cst_23 = arith.constant dense<0.000000e+00> : vector<64x128xf32>
    %39 = tpu.matmul %38, %25, %cst_23 {dimension_numbers = #tpu.dot_dimension_numbers<[1], [0], [0], [1], [0, 0, 1, 1], [], []>} : vector<64x128xf32>, vector<128x128xf32>, vector<64x128xf32> -> vector<64x128xf32>
    %40 = vector.broadcast %30 : vector<1x128xf32> to vector<64x128xf32>
    %41 = arith.addf %39, %40 : vector<64x128xf32>
    %cst_24 = arith.constant 0.000000e+00 : f32
    %42 = vector.broadcast %cst_24 : f32 to vector<64x128xf32>
    %43 = arith.maximumf %41, %42 : vector<64x128xf32>
    %cst_25 = arith.constant dense<0.000000e+00> : vector<64x128xf32>
    %44 = tpu.matmul %43, %26, %cst_25 {dimension_numbers = #tpu.dot_dimension_numbers<[1], [0], [0], [1], [0, 0, 1, 1], [], []>} : vector<64x128xf32>, vector<128x128xf32>, vector<64x128xf32> -> vector<64x128xf32>
    %45 = vector.broadcast %31 : vector<1x128xf32> to vector<64x128xf32>
    %46 = arith.addf %44, %45 : vector<64x128xf32>
    %cst_26 = arith.constant 0.000000e+00 : f32
    %47 = vector.broadcast %cst_26 : f32 to vector<64x128xf32>
    %48 = arith.maximumf %46, %47 : vector<64x128xf32>
    %cst_27 = arith.constant dense<0.000000e+00> : vector<64x128xf32>
    %49 = tpu.matmul %48, %27, %cst_27 {dimension_numbers = #tpu.dot_dimension_numbers<[1], [0], [0], [1], [0, 0, 1, 1], [], []>} : vector<64x128xf32>, vector<128x128xf32>, vector<64x128xf32> -> vector<64x128xf32>
    %50 = vector.broadcast %32 : vector<1x128xf32> to vector<64x128xf32>
    %51 = arith.addf %49, %50 : vector<64x128xf32>
    %cst_28 = arith.constant 0.000000e+00 : f32
    %52 = vector.broadcast %cst_28 : f32 to vector<64x128xf32>
    %53 = arith.maximumf %51, %52 : vector<64x128xf32>
    %cst_29 = arith.constant dense<0.000000e+00> : vector<64x128xf32>
    %54 = tpu.matmul %53, %28, %cst_29 {dimension_numbers = #tpu.dot_dimension_numbers<[1], [0], [0], [1], [0, 0, 1, 1], [], []>} : vector<64x128xf32>, vector<128x128xf32>, vector<64x128xf32> -> vector<64x128xf32>
    %55 = vector.broadcast %33 : vector<1x128xf32> to vector<64x128xf32>
    %56 = arith.addf %54, %55 : vector<64x128xf32>
    %57 = math.tanh %56 : vector<64x128xf32>
    %c0_30 = arith.constant 0 : index
    %c0_31 = arith.constant 0 : index
    %58 = vector.load %arg5[%c0_30, %c0_31] : memref<64x128xf32, #tpu.memory_space<vmem>>, vector<64x128xf32>
    tpu.vector_store %arg5[%c0_30, %c0_31], %57 {strides = array<i32>} : memref<64x128xf32, #tpu.memory_space<vmem>>, vector<64x128xf32>,
    return
  }
  func.func @transform_0(%arg0: i32) -> (i32, i32) {
    %c0_i32 = arith.constant 0 : i32
    %c0_i32_0 = arith.constant 0 : i32
    %c0_i32_1 = arith.constant 0 : i32
    return %c0_i32, %c0_i32_0 : i32, i32
  }
  func.func @transform_1(%arg0: i32) -> (i32, i32) {
    %c0_i32 = arith.constant 0 : i32
    %c0_i32_0 = arith.constant 0 : i32
    %c0_i32_1 = arith.constant 0 : i32
    return %c0_i32, %c0_i32_0 : i32, i32
  }
  func.func @transform_2(%arg0: i32) -> (i32, i32) {
    %c0_i32 = arith.constant 0 : i32
    %c0_i32_0 = arith.constant 0 : i32
    %c0_i32_1 = arith.constant 0 : i32
    return %c0_i32, %c0_i32_0 : i32, i32
  }
  func.func @transform_3(%arg0: i32) -> (i32, i32) {
    %c0_i32 = arith.constant 0 : i32
    %c0_i32_0 = arith.constant 0 : i32
    %c0_i32_1 = arith.constant 0 : i32
    return %c0_i32, %c0_i32_0 : i32, i32
  }
  func.func @transform_4(%arg0: i32) -> (i32, i32) {
    %c0_i32 = arith.constant 0 : i32
    %c0_i32_0 = arith.constant 0 : i32
    %c0_i32_1 = arith.constant 0 : i32
    return %c0_i32, %c0_i32_0 : i32, i32
  }
}

</mosaic_0001>

<llo_original>
// kernel: deep_q_network_forward.1
$region0: #{deep_q_network_forward.1}
  #allocation0 [shape = 'u32[]', space=smem, size = 0x4, offset = 0x4, fixed_abs, tag = 'smem constant byte address 0x4 - core index']
  #allocation1 [shape = 'u32[144,128]{1,0:T(1,128)}', space=vmem, size = 0x12000, scoped, tag = 'internal scratch']
  %s0 = inlined_call_operand.vmem [shape: f32[2,16], index: 0, kind: input, shape index: {}]
  %s1 = inlined_call_operand.vmem [shape: f32[640,128], index: 1, kind: input, shape index: {}]
  %s2 = inlined_call_operand.vmem [shape: f32[8,128], index: 2, kind: input, shape index: {}]
  %s3 = inlined_call_operand.vmem [shape: f32[64,16], index: 3, kind: input, shape index: {}]
  %s4 = inlined_call_operand.vmem [shape: f32[64,128], index: 4, kind: output, shape index: {}]
  %s5 = sld [smem:[#allocation0]]
  $region26: #{deep_q_network_forward.1} parent=0
    _
  %s7 = ssub.s32 1, %s5
  %s8 = scalar_select 0, %s7, %s5
  // Predicated region
  $region2: #{deep_q_network_forward.1} parent=0 // pred_check
    _
  $region3: #{deep_q_network_forward.1} parent=0 // pred_check_branch
    %10 = sbr.rel (0) target = $region5
  $region4: #{deep_q_network_forward.1} parent=0 // pred_region
    _
  $region5: #{deep_q_network_forward.1} parent=0 // pred_fallthru
    _
  // Predicated region
  $region6: #{deep_q_network_forward.1} parent=0 // pred_check
    _
  $region7: #{deep_q_network_forward.1} parent=0 // pred_check_branch
    %12 = sbr.rel (0) target = $region9
  $region8: #{deep_q_network_forward.1} parent=0 // pred_region
    _
  $region9: #{deep_q_network_forward.1} parent=0 // pred_fallthru
    _
  // Predicated region
  $region10: #{deep_q_network_forward.1} parent=0 // pred_check
    _
  $region11: #{deep_q_network_forward.1} parent=0 // pred_check_branch
    %14 = sbr.rel (0) target = $region13
  $region12: #{deep_q_network_forward.1} parent=0 // pred_region
    _
  $region13: #{deep_q_network_forward.1} parent=0 // pred_fallthru
    _
  // Predicated region
  $region14: #{deep_q_network_forward.1} parent=0 // pred_check
    _
  $region15: #{deep_q_network_forward.1} parent=0 // pred_check_branch
    %16 = sbr.rel (0) target = $region17
  $region16: #{deep_q_network_forward.1} parent=0 // pred_region
    _
  $region17: #{deep_q_network_forward.1} parent=0 // pred_fallthru
    _
  %v17 = vld [vmem:[%s3] sm:$0xff]
  %v18 = vld [vmem:[%s3 + $0x8] sm:$0xff]
  %v19 = vld [vmem:[%s3 + $0x10] sm:$0xff]
  %v20 = vld [vmem:[%s3 + $0x18] sm:$0xff]
  %v21 = vld [vmem:[%s3 + $0x20] sm:$0xff]
  %v22 = vld [vmem:[%s3 + $0x28] sm:$0xff]
  %v23 = vld [vmem:[%s3 + $0x30] sm:$0xff]
  %v24 = vld [vmem:[%s3 + $0x38] sm:$0xff]
  %vm25 = vcmask 130048
  %v26 = vsel %vm25, %v17, 0.0
  %v27 = vsel %vm25, %v18, 0.0
  %v28 = vadd.f32 %v26, %v27
  %v29 = vsel %vm25, %v19, 0.0
  %v30 = vadd.f32 %v28, %v29
  %v31 = vsel %vm25, %v20, 0.0
  %v32 = vadd.f32 %v30, %v31
  %v33 = vsel %vm25, %v21, 0.0
  %v34 = vadd.f32 %v32, %v33
  %v35 = vsel %vm25, %v22, 0.0
  %v36 = vadd.f32 %v34, %v35
  %v37 = vsel %vm25, %v23, 0.0
  %v38 = vadd.f32 %v36, %v37
  %v39 = vsel %vm25, %v24, 0.0
  %v40 = vadd.f32 %v38, %v39
  %v41 = vrot.slane %v40, 4
  %v42 = vadd.f32 %v40, %v41
  %v43 = vrot.slane %v42, 2
  %v44 = vadd.f32 %v42, %v43
  %v45 = vrot.slane %v44, 1
  %v46 = vadd.f32 %v44, %v45
  %v47 = vrcp.pop 64.0
  %v48 = vmul.f32 %v46, %v47
  %v49 = vsub.f32 %v17, %v48
  %v50 = vsub.f32 %v18, %v48
  %v51 = vsub.f32 %v19, %v48
  %v52 = vsub.f32 %v20, %v48
  %v53 = vsub.f32 %v21, %v48
  %v54 = vsub.f32 %v22, %v48
  %v55 = vsub.f32 %v23, %v48
  %v56 = vsub.f32 %v24, %v48
  %v57 = vmul.f32 %v49, %v49
  %v58 = vmul.f32 %v50, %v50
  %v59 = vmul.f32 %v51, %v51
  %v60 = vmul.f32 %v52, %v52
  %v61 = vmul.f32 %v53, %v53
  %v62 = vmul.f32 %v54, %v54
  %v63 = vmul.f32 %v55, %v55
  %v64 = vmul.f32 %v56, %v56
  %v65 = vsel %vm25, %v57, 0.0
  %v66 = vsel %vm25, %v58, 0.0
  %v67 = vadd.f32 %v65, %v66
  %v68 = vsel %vm25, %v59, 0.0
  %v69 = vadd.f32 %v67, %v68
  %v70 = vsel %vm25, %v60, 0.0
  %v71 = vadd.f32 %v69, %v70
  %v72 = vsel %vm25, %v61, 0.0
  %v73 = vadd.f32 %v71, %v72
  %v74 = vsel %vm25, %v62, 0.0
  %v75 = vadd.f32 %v73, %v74
  %v76 = vsel %vm25, %v63, 0.0
  %v77 = vadd.f32 %v75, %v76
  %v78 = vsel %vm25, %v64, 0.0
  %v79 = vadd.f32 %v77, %v78
  %v80 = vrot.slane %v79, 4
  %v81 = vadd.f32 %v79, %v80
  %v82 = vrot.slane %v81, 2
  %v83 = vadd.f32 %v81, %v82
  %v84 = vrot.slane %v83, 1
  %v85 = vadd.f32 %v83, %v84
  %v86 = vmul.f32 %v85, %v47
  %v87 = vadd.f32 %v86, 1e-05
  %v88 = vrsqrt.pop %v87
  %v89 = vld [vmem:[%s0] sm:$0x1]
  %v90 = vld [vmem:[%s0 + $0x1] sm:$0x1]
  %v91 = vmul.f32 %v88, %v89
  %v92 = vlaneseq
  %v93 = vshrl.u32 %v92, 7
  %v94 = vsub.s32 0, %v93
  %v95 = vrot.slane %v91, %v94
  %v96 = vmul.f32 %v49, %v95
  %v97 = vmul.f32 %v50, %v95
  %v98 = vmul.f32 %v51, %v95
  %v99 = vmul.f32 %v52, %v95
  %v100 = vmul.f32 %v53, %v95
  %v101 = vmul.f32 %v54, %v95
  %v102 = vmul.f32 %v55, %v95
  %v103 = vmul.f32 %v56, %v95
  %v104 = vlaneseq
  %v105 = vshrl.u32 %v104, 7
  %v106 = vsub.s32 0, %v105
  %v107 = vrot.slane %v90, %v106
  %v108 = vadd.f32 %v96, %v107
  %v109 = vadd.f32 %v97, %v107
  %v110 = vadd.f32 %v98, %v107
  %v111 = vadd.f32 %v99, %v107
  %v112 = vadd.f32 %v100, %v107
  %v113 = vadd.f32 %v101, %v107
  %v114 = vadd.f32 %v102, %v107
  %v115 = vadd.f32 %v103, %v107
  %v116 = vld [vmem:[%s1] sm:$0xff]
  %v117 = vld [vmem:[%s1 + $0x8] sm:$0xff]
  %v118 = vld [vmem:[%s1 + $0x80] sm:$0xff]
  %v119 = vld [vmem:[%s1 + $0x88] sm:$0xff]
  %v120 = vld [vmem:[%s1 + $0x90] sm:$0xff]
  %v121 = vld [vmem:[%s1 + $0x98] sm:$0xff]
  %v122 = vld [vmem:[%s1 + $0xa0] sm:$0xff]
  %v123 = vld [vmem:[%s1 + $0xa8] sm:$0xff]
  %v124 = vld [vmem:[%s1 + $0xb0] sm:$0xff]
  %v125 = vld [vmem:[%s1 + $0xb8] sm:$0xff]
  %v126 = vld [vmem:[%s1 + $0xc0] sm:$0xff]
  %v127 = vld [vmem:[%s1 + $0xc8] sm:$0xff]
  %v128 = vld [vmem:[%s1 + $0xd0] sm:$0xff]
  %v129 = vld [vmem:[%s1 + $0xd8] sm:$0xff]
  %v130 = vld [vmem:[%s1 + $0xe0] sm:$0xff]
  %v131 = vld [vmem:[%s1 + $0xe8] sm:$0xff]
  %v132 = vld [vmem:[%s1 + $0xf0] sm:$0xff]
  %v133 = vld [vmem:[%s1 + $0xf8] sm:$0xff]
  %v134 = vld [vmem:[%s1 + $0x100] sm:$0xff]
  %v135 = vld [vmem:[%s1 + $0x108] sm:$0xff]
  %v136 = vld [vmem:[%s1 + $0x110] sm:$0xff]
  %v137 = vld [vmem:[%s1 + $0x118] sm:$0xff]
  %v138 = vld [vmem:[%s1 + $0x120] sm:$0xff]
  %v139 = vld [vmem:[%s1 + $0x128] sm:$0xff]
  %v140 = vld [vmem:[%s1 + $0x130] sm:$0xff]
  %v141 = vld [vmem:[%s1 + $0x138] sm:$0xff]
  %v142 = vld [vmem:[%s1 + $0x140] sm:$0xff]
  %v143 = vld [vmem:[%s1 + $0x148] sm:$0xff]
  %v144 = vld [vmem:[%s1 + $0x150] sm:$0xff]
  %v145 = vld [vmem:[%s1 + $0x158] sm:$0xff]
  %v146 = vld [vmem:[%s1 + $0x160] sm:$0xff]
  %v147 = vld [vmem:[%s1 + $0x168] sm:$0xff]
  %v148 = vld [vmem:[%s1 + $0x170] sm:$0xff]
  %v149 = vld [vmem:[%s1 + $0x178] sm:$0xff]
  %v150 = vld [vmem:[%s1 + $0x180] sm:$0xff]
  %v151 = vld [vmem:[%s1 + $0x188] sm:$0xff]
  %v152 = vld [vmem:[%s1 + $0x190] sm:$0xff]
  %v153 = vld [vmem:[%s1 + $0x198] sm:$0xff]
  %v154 = vld [vmem:[%s1 + $0x1a0] sm:$0xff]
  %v155 = vld [vmem:[%s1 + $0x1a8] sm:$0xff]
  %v156 = vld [vmem:[%s1 + $0x1b0] sm:$0xff]
  %v157 = vld [vmem:[%s1 + $0x1b8] sm:$0xff]
  %v158 = vld [vmem:[%s1 + $0x1c0] sm:$0xff]
  %v159 = vld [vmem:[%s1 + $0x1c8] sm:$0xff]
  %v160 = vld [vmem:[%s1 + $0x1d0] sm:$0xff]
  %v161 = vld [vmem:[%s1 + $0x1d8] sm:$0xff]
  %v162 = vld [vmem:[%s1 + $0x1e0] sm:$0xff]
  %v163 = vld [vmem:[%s1 + $0x1e8] sm:$0xff]
  %v164 = vld [vmem:[%s1 + $0x1f0] sm:$0xff]
  %v165 = vld [vmem:[%s1 + $0x1f8] sm:$0xff]
  %v166 = vld [vmem:[%s1 + $0x200] sm:$0xff]
  %v167 = vld [vmem:[%s1 + $0x208] sm:$0xff]
  %v168 = vld [vmem:[%s1 + $0x210] sm:$0xff]
  %v169 = vld [vmem:[%s1 + $0x218] sm:$0xff]
  %v170 = vld [vmem:[%s1 + $0x220] sm:$0xff]
  %v171 = vld [vmem:[%s1 + $0x228] sm:$0xff]
  %v172 = vld [vmem:[%s1 + $0x230] sm:$0xff]
  %v173 = vld [vmem:[%s1 + $0x238] sm:$0xff]
  %v174 = vld [vmem:[%s1 + $0x240] sm:$0xff]
  %v175 = vld [vmem:[%s1 + $0x248] sm:$0xff]
  %v176 = vld [vmem:[%s1 + $0x250] sm:$0xff]
  %v177 = vld [vmem:[%s1 + $0x258] sm:$0xff]
  %v178 = vld [vmem:[%s1 + $0x260] sm:$0xff]
  %v179 = vld [vmem:[%s1 + $0x268] sm:$0xff]
  %v180 = vld [vmem:[%s1 + $0x270] sm:$0xff]
  %v181 = vld [vmem:[%s1 + $0x278] sm:$0xff]
  %v182 = vld [vmem:[%s2] sm:$0x1]
  %v183 = vld [vmem:[%s2 + $0x1] sm:$0x1]
  %v184 = vld [vmem:[%s2 + $0x2] sm:$0x1]
  %v185 = vld [vmem:[%s2 + $0x3] sm:$0x1]
  %v186 = vld [vmem:[%s2 + $0x4] sm:$0x1]
  %v187 = vlaneseq
  %v188 = vshrl.u32 %v187, 7
  %v189 = vsub.s32 0, %v188
  %v190 = vrot.slane %v182, %v189
  %v192 = vsel %vm25, %v108, 0
  %v195 = vsel %vm25, %v109, 0
  %v198 = vsel %vm25, %v110, 0
  %v201 = vsel %vm25, %v111, 0
  %v204 = vsel %vm25, %v112, 0
  %v207 = vsel %vm25, %v113, 0
  %v210 = vsel %vm25, %v114, 0
  %v213 = vsel %vm25, %v115, 0
  %215 = vmatprep.subr.mxu0 0.0
  %216 = vmatpush1.msra.mxu0 %v116
  %217 = vmatprep.subr.mxu0 0.0
  %218 = vmatpush1.msra.mxu0 %v117
  %219 = vmatprep.subr.mxu0 0.0
  %220 = vmatpush1.msra.mxu0 0.0
  %221 = vmatprep.subr.mxu0 0.0
  %222 = vmatpush1.msra.mxu0 0.0
  %223 = vmatprep.subr.mxu0 0.0
  %224 = vmatpush1.msra.mxu0 0.0
  %225 = vmatprep.subr.mxu0 0.0
  %226 = vmatpush1.msra.mxu0 0.0
  %227 = vmatprep.subr.mxu0 0.0
  %228 = vmatpush1.msra.mxu0 0.0
  %229 = vmatprep.subr.mxu0 0.0
  %230 = vmatpush1.msra.mxu0 0.0
  %231 = vmatprep.subr.mxu0 0.0
  %232 = vmatpush1.msra.mxu0 0.0
  %233 = vmatprep.subr.mxu0 0.0
  %234 = vmatpush1.msra.mxu0 0.0
  %235 = vmatprep.subr.mxu0 0.0
  %236 = vmatpush1.msra.mxu0 0.0
  %237 = vmatprep.subr.mxu0 0.0
  %238 = vmatpush1.msra.mxu0 0.0
  %239 = vmatprep.subr.mxu0 0.0
  %240 = vmatpush1.msra.mxu0 0.0
  %241 = vmatprep.subr.mxu0 0.0
  %242 = vmatpush1.msra.mxu0 0.0
  %243 = vmatprep.subr.mxu0 0.0
  %244 = vmatpush1.msra.mxu0 0.0
  %245 = vmatprep.subr.mxu0 0.0
  %246 = vmatpush1.msra.mxu0 0.0
  %247 = vmatprep.subr.mxu0 0.0
  %248 = vmatpush1.msra.mxu0 0.0
  %249 = vmatprep.subr.mxu0 0.0
  %250 = vmatpush1.msra.mxu0 0.0
  %251 = vmatprep.subr.mxu0 0.0
  %252 = vmatpush1.msra.mxu0 0.0
  %253 = vmatprep.subr.mxu0 0.0
  %254 = vmatpush1.msra.mxu0 0.0
  %255 = vmatprep.subr.mxu0 0.0
  %256 = vmatpush1.msra.mxu0 0.0
  %257 = vmatprep.subr.mxu0 0.0
  %258 = vmatpush1.msra.mxu0 0.0
  %259 = vmatprep.subr.mxu0 0.0
  %260 = vmatpush1.msra.mxu0 0.0
  %261 = vmatprep.subr.mxu0 0.0
  %262 = vmatpush1.msra.mxu0 0.0
  %263 = vmatprep.subr.mxu0 0.0
  %264 = vmatpush1.msra.mxu0 0.0
  %265 = vmatprep.subr.mxu0 0.0
  %266 = vmatpush1.msra.mxu0 0.0
  %267 = vmatprep.subr.mxu0 0.0
  %268 = vmatpush1.msra.mxu0 0.0
  %269 = vmatprep.subr.mxu0 0.0
  %270 = vmatpush1.msra.mxu0 0.0
  %271 = vmatprep.subr.mxu0 0.0
  %272 = vmatpush1.msra.mxu0 0.0
  %273 = vmatprep.subr.mxu0 0.0
  %274 = vmatpush1.msra.mxu0 0.0
  %275 = vmatprep.subr.mxu0 0.0
  %276 = vmatpush1.msra.mxu0 0.0
  %277 = vmatprep.subr.mxu0 0.0
  %278 = vmatpush1.msra.mxu0 0.0
  %279 = vmatprep.mubr.f32.mxu0 0.0
  %280 = vmatmul.mubr.f32.gmra.mrb[0].mxu0 %v192
  %v281 = vpop.f32.mrb[0].mxu0
  %v282 = vadd.f32 %v190, %v281
  %v283 = vpop.f32.mrb[0].mxu0
  %284 = vmatprep.mubr.f32.mxu0 0.0
  %285 = vmatmul.mubr.f32.gmra.mrb[0].mxu0 %v195
  %v286 = vpop.f32.mrb[0].mxu0
  %v287 = vadd.f32 %v190, %v286
  %v288 = vpop.f32.mrb[0].mxu0
  %289 = vmatprep.mubr.f32.mxu0 0.0
  %290 = vmatmul.mubr.f32.gmra.mrb[0].mxu0 %v198
  %v291 = vpop.f32.mrb[0].mxu0
  %v292 = vadd.f32 %v190, %v291
  %v293 = vpop.f32.mrb[0].mxu0
  %294 = vmatprep.mubr.f32.mxu0 0.0
  %295 = vmatmul.mubr.f32.gmra.mrb[0].mxu0 %v201
  %v296 = vpop.f32.mrb[0].mxu0
  %v297 = vadd.f32 %v190, %v296
  %v298 = vpop.f32.mrb[0].mxu0
  %299 = vmatprep.mubr.f32.mxu0 0.0
  %300 = vmatmul.mubr.f32.gmra.mrb[0].mxu0 %v204
  %v301 = vpop.f32.mrb[0].mxu0
  %v302 = vadd.f32 %v190, %v301
  %v303 = vpop.f32.mrb[0].mxu0
  %304 = vmatprep.mubr.f32.mxu0 0.0
  %305 = vmatmul.mubr.f32.gmra.mrb[0].mxu0 %v207
  %v306 = vpop.f32.mrb[0].mxu0
  %v307 = vadd.f32 %v190, %v306
  %v308 = vpop.f32.mrb[0].mxu0
  %309 = vmatprep.mubr.f32.mxu0 0.0
  %310 = vmatmul.mubr.f32.gmra.mrb[0].mxu0 %v210
  %v311 = vpop.f32.mrb[0].mxu0
  %v312 = vadd.f32 %v190, %v311
  %v313 = vpop.f32.mrb[0].mxu0
  %314 = vmatprep.mubr.f32.mxu0 0.0
  %315 = vmatmul.mubr.f32.gmra.mrb[0].mxu0 %v213
  %v316 = vpop.f32.mrb[0].mxu0
  %v317 = vadd.f32 %v190, %v316
  %v318 = vpop.f32.mrb[0].mxu0
  %319 = vdwg.mxu0
  %v320 = vmax.f32 %v282, 0.0
  %v321 = vmax.f32 %v287, 0.0
  %v322 = vmax.f32 %v292, 0.0
  %v323 = vmax.f32 %v297, 0.0
  %v324 = vmax.f32 %v302, 0.0
  %v325 = vmax.f32 %v307, 0.0
  %v326 = vmax.f32 %v312, 0.0
  %v327 = vmax.f32 %v317, 0.0
  %v328 = vlaneseq
  %v329 = vshrl.u32 %v328, 7
  %v330 = vsub.s32 0, %v329
  %v331 = vrot.slane %v183, %v330
  %332 = vmatprep.subr.mxu0 0.0
  %333 = vmatpush1.msra.mxu0 %v118
  %334 = vmatprep.subr.mxu0 0.0
  %335 = vmatpush1.msra.mxu0 %v119
  %336 = vmatprep.subr.mxu0 0.0
  %337 = vmatpush1.msra.mxu0 %v120
  %338 = vmatprep.subr.mxu0 0.0
  %339 = vmatpush1.msra.mxu0 %v121
  %340 = vmatprep.subr.mxu0 0.0
  %341 = vmatpush1.msra.mxu0 %v122
  %342 = vmatprep.subr.mxu0 0.0
  %343 = vmatpush1.msra.mxu0 %v123
  %344 = vmatprep.subr.mxu0 0.0
  %345 = vmatpush1.msra.mxu0 %v124
  %346 = vmatprep.subr.mxu0 0.0
  %347 = vmatpush1.msra.mxu0 %v125
  %348 = vmatprep.subr.mxu0 0.0
  %349 = vmatpush1.msra.mxu0 %v126
  %350 = vmatprep.subr.mxu0 0.0
  %351 = vmatpush1.msra.mxu0 %v127
  %352 = vmatprep.subr.mxu0 0.0
  %353 = vmatpush1.msra.mxu0 %v128
  %354 = vmatprep.subr.mxu0 0.0
  %355 = vmatpush1.msra.mxu0 %v129
  %356 = vmatprep.subr.mxu0 0.0
  %357 = vmatpush1.msra.mxu0 %v130
  %358 = vmatprep.subr.mxu0 0.0
  %359 = vmatpush1.msra.mxu0 %v131
  %360 = vmatprep.subr.mxu0 0.0
  %361 = vmatpush1.msra.mxu0 %v132
  %362 = vmatprep.subr.mxu0 0.0
  %363 = vmatpush1.msra.mxu0 %v133
  %364 = vmatprep.subr.mxu0 0.0
  %365 = vmatpush1.msra.mxu0 0.0
  %366 = vmatprep.subr.mxu0 0.0
  %367 = vmatpush1.msra.mxu0 0.0
  %368 = vmatprep.subr.mxu0 0.0
  %369 = vmatpush1.msra.mxu0 0.0
  %370 = vmatprep.subr.mxu0 0.0
  %371 = vmatpush1.msra.mxu0 0.0
  %372 = vmatprep.subr.mxu0 0.0
  %373 = vmatpush1.msra.mxu0 0.0
  %374 = vmatprep.subr.mxu0 0.0
  %375 = vmatpush1.msra.mxu0 0.0
  %376 = vmatprep.subr.mxu0 0.0
  %377 = vmatpush1.msra.mxu0 0.0
  %378 = vmatprep.subr.mxu0 0.0
  %379 = vmatpush1.msra.mxu0 0.0
  %380 = vmatprep.subr.mxu0 0.0
  %381 = vmatpush1.msra.mxu0 0.0
  %382 = vmatprep.subr.mxu0 0.0
  %383 = vmatpush1.msra.mxu0 0.0
  %384 = vmatprep.subr.mxu0 0.0
  %385 = vmatpush1.msra.mxu0 0.0
  %386 = vmatprep.subr.mxu0 0.0
  %387 = vmatpush1.msra.mxu0 0.0
  %388 = vmatprep.subr.mxu0 0.0
  %389 = vmatpush1.msra.mxu0 0.0
  %390 = vmatprep.subr.mxu0 0.0
  %391 = vmatpush1.msra.mxu0 0.0
  %392 = vmatprep.subr.mxu0 0.0
  %393 = vmatpush1.msra.mxu0 0.0
  %394 = vmatprep.subr.mxu0 0.0
  %395 = vmatpush1.msra.mxu0 0.0
  %396 = vmatprep.mubr.f32.mxu0 0.0
  %397 = vmatmul.mubr.f32.gmra.mrb[0].mxu0 %v320
  %v398 = vpop.f32.mrb[0].mxu0
  %v399 = vadd.f32 %v331, %v398
  %v400 = vpop.f32.mrb[0].mxu0
  %401 = vmatprep.mubr.f32.mxu0 0.0
  %402 = vmatmul.mubr.f32.gmra.mrb[0].mxu0 %v321
  %v403 = vpop.f32.mrb[0].mxu0
  %v404 = vadd.f32 %v331, %v403
  %v405 = vpop.f32.mrb[0].mxu0
  %406 = vmatprep.mubr.f32.mxu0 0.0
  %407 = vmatmul.mubr.f32.gmra.mrb[0].mxu0 %v322
  %v408 = vpop.f32.mrb[0].mxu0
  %v409 = vadd.f32 %v331, %v408
  %v410 = vpop.f32.mrb[0].mxu0
  %411 = vmatprep.mubr.f32.mxu0 0.0
  %412 = vmatmul.mubr.f32.gmra.mrb[0].mxu0 %v323
  %v413 = vpop.f32.mrb[0].mxu0
  %v414 = vadd.f32 %v331, %v413
  %v415 = vpop.f32.mrb[0].mxu0
  %416 = vmatprep.mubr.f32.mxu0 0.0
  %417 = vmatmul.mubr.f32.gmra.mrb[0].mxu0 %v324
  %v418 = vpop.f32.mrb[0].mxu0
  %v419 = vadd.f32 %v331, %v418
  %v420 = vpop.f32.mrb[0].mxu0
  %421 = vmatprep.mubr.f32.mxu0 0.0
  %422 = vmatmul.mubr.f32.gmra.mrb[0].mxu0 %v325
  %v423 = vpop.f32.mrb[0].mxu0
  %v424 = vadd.f32 %v331, %v423
  %v425 = vpop.f32.mrb[0].mxu0
  %426 = vmatprep.mubr.f32.mxu0 0.0
  %427 = vmatmul.mubr.f32.gmra.mrb[0].mxu0 %v326
  %v428 = vpop.f32.mrb[0].mxu0
  %v429 = vadd.f32 %v331, %v428
  %v430 = vpop.f32.mrb[0].mxu0
  %431 = vmatprep.mubr.f32.mxu0 0.0
  %432 = vmatmul.mubr.f32.gmra.mrb[0].mxu0 %v327
  %v433 = vpop.f32.mrb[0].mxu0
  %v434 = vadd.f32 %v331, %v433
  %v435 = vpop.f32.mrb[0].mxu0
  %436 = vdwg.mxu0
  %v437 = vmax.f32 %v399, 0.0
  %v438 = vmax.f32 %v404, 0.0
  %v439 = vmax.f32 %v409, 0.0
  %v440 = vmax.f32 %v414, 0.0
  %v441 = vmax.f32 %v419, 0.0
  %v442 = vmax.f32 %v424, 0.0
  %v443 = vmax.f32 %v429, 0.0
  %v444 = vmax.f32 %v434, 0.0
  %v445 = vlaneseq
  %v446 = vshrl.u32 %v445, 7
  %v447 = vsub.s32 0, %v446
  %v448 = vrot.slane %v184, %v447
  %449 = vmatprep.subr.mxu0 0.0
  %450 = vmatpush1.msra.mxu0 %v134
  %451 = vmatprep.subr.mxu0 0.0
  %452 = vmatpush1.msra.mxu0 %v135
  %453 = vmatprep.subr.mxu0 0.0
  %454 = vmatpush1.msra.mxu0 %v136
  %455 = vmatprep.subr.mxu0 0.0
  %456 = vmatpush1.msra.mxu0 %v137
  %457 = vmatprep.subr.mxu0 0.0
  %458 = vmatpush1.msra.mxu0 %v138
  %459 = vmatprep.subr.mxu0 0.0
  %460 = vmatpush1.msra.mxu0 %v139
  %461 = vmatprep.subr.mxu0 0.0
  %462 = vmatpush1.msra.mxu0 %v140
  %463 = vmatprep.subr.mxu0 0.0
  %464 = vmatpush1.msra.mxu0 %v141
  %465 = vmatprep.subr.mxu0 0.0
  %466 = vmatpush1.msra.mxu0 %v142
  %467 = vmatprep.subr.mxu0 0.0
  %468 = vmatpush1.msra.mxu0 %v143
  %469 = vmatprep.subr.mxu0 0.0
  %470 = vmatpush1.msra.mxu0 %v144
  %471 = vmatprep.subr.mxu0 0.0
  %472 = vmatpush1.msra.mxu0 %v145
  %473 = vmatprep.subr.mxu0 0.0
  %474 = vmatpush1.msra.mxu0 %v146
  %475 = vmatprep.subr.mxu0 0.0
  %476 = vmatpush1.msra.mxu0 %v147
  %477 = vmatprep.subr.mxu0 0.0
  %478 = vmatpush1.msra.mxu0 %v148
  %479 = vmatprep.subr.mxu0 0.0
  %480 = vmatpush1.msra.mxu0 %v149
  %481 = vmatprep.subr.mxu0 0.0
  %482 = vmatpush1.msra.mxu0 0.0
  %483 = vmatprep.subr.mxu0 0.0
  %484 = vmatpush1.msra.mxu0 0.0
  %485 = vmatprep.subr.mxu0 0.0
  %486 = vmatpush1.msra.mxu0 0.0
  %487 = vmatprep.subr.mxu0 0.0
  %488 = vmatpush1.msra.mxu0 0.0
  %489 = vmatprep.subr.mxu0 0.0
  %490 = vmatpush1.msra.mxu0 0.0
  %491 = vmatprep.subr.mxu0 0.0
  %492 = vmatpush1.msra.mxu0 0.0
  %493 = vmatprep.subr.mxu0 0.0
  %494 = vmatpush1.msra.mxu0 0.0
  %495 = vmatprep.subr.mxu0 0.0
  %496 = vmatpush1.msra.mxu0 0.0
  %497 = vmatprep.subr.mxu0 0.0
  %498 = vmatpush1.msra.mxu0 0.0
  %499 = vmatprep.subr.mxu0 0.0
  %500 = vmatpush1.msra.mxu0 0.0
  %501 = vmatprep.subr.mxu0 0.0
  %502 = vmatpush1.msra.mxu0 0.0
  %503 = vmatprep.subr.mxu0 0.0
  %504 = vmatpush1.msra.mxu0 0.0
  %505 = vmatprep.subr.mxu0 0.0
  %506 = vmatpush1.msra.mxu0 0.0
  %507 = vmatprep.subr.mxu0 0.0
  %508 = vmatpush1.msra.mxu0 0.0
  %509 = vmatprep.subr.mxu0 0.0
  %510 = vmatpush1.msra.mxu0 0.0
  %511 = vmatprep.subr.mxu0 0.0
  %512 = vmatpush1.msra.mxu0 0.0
  %513 = vmatprep.mubr.f32.mxu0 0.0
  %514 = vmatmul.mubr.f32.gmra.mrb[0].mxu0 %v437
  %v515 = vpop.f32.mrb[0].mxu0
  %v516 = vadd.f32 %v448, %v515
  %v517 = vpop.f32.mrb[0].mxu0
  %518 = vmatprep.mubr.f32.mxu0 0.0
  %519 = vmatmul.mubr.f32.gmra.mrb[0].mxu0 %v438
  %v520 = vpop.f32.mrb[0].mxu0
  %v521 = vadd.f32 %v448, %v520
  %v522 = vpop.f32.mrb[0].mxu0
  %523 = vmatprep.mubr.f32.mxu0 0.0
  %524 = vmatmul.mubr.f32.gmra.mrb[0].mxu0 %v439
  %v525 = vpop.f32.mrb[0].mxu0
  %v526 = vadd.f32 %v448, %v525
  %v527 = vpop.f32.mrb[0].mxu0
  %528 = vmatprep.mubr.f32.mxu0 0.0
  %529 = vmatmul.mubr.f32.gmra.mrb[0].mxu0 %v440
  %v530 = vpop.f32.mrb[0].mxu0
  %v531 = vadd.f32 %v448, %v530
  %v532 = vpop.f32.mrb[0].mxu0
  %533 = vmatprep.mubr.f32.mxu0 0.0
  %534 = vmatmul.mubr.f32.gmra.mrb[0].mxu0 %v441
  %v535 = vpop.f32.mrb[0].mxu0
  %v536 = vadd.f32 %v448, %v535
  %v537 = vpop.f32.mrb[0].mxu0
  %538 = vmatprep.mubr.f32.mxu0 0.0
  %539 = vmatmul.mubr.f32.gmra.mrb[0].mxu0 %v442
  %v540 = vpop.f32.mrb[0].mxu0
  %v541 = vadd.f32 %v448, %v540
  %v542 = vpop.f32.mrb[0].mxu0
  %543 = vmatprep.mubr.f32.mxu0 0.0
  %544 = vmatmul.mubr.f32.gmra.mrb[0].mxu0 %v443
  %v545 = vpop.f32.mrb[0].mxu0
  %v546 = vadd.f32 %v448, %v545
  %v547 = vpop.f32.mrb[0].mxu0
  %548 = vmatprep.mubr.f32.mxu0 0.0
  %549 = vmatmul.mubr.f32.gmra.mrb[0].mxu0 %v444
  %v550 = vpop.f32.mrb[0].mxu0
  %v551 = vadd.f32 %v448, %v550
  %v552 = vpop.f32.mrb[0].mxu0
  %553 = vdwg.mxu0
  %v554 = vmax.f32 %v516, 0.0
  %v555 = vmax.f32 %v521, 0.0
  %v556 = vmax.f32 %v526, 0.0
  %v557 = vmax.f32 %v531, 0.0
  %v558 = vmax.f32 %v536, 0.0
  %v559 = vmax.f32 %v541, 0.0
  %v560 = vmax.f32 %v546, 0.0
  %v561 = vmax.f32 %v551, 0.0
  %v562 = vlaneseq
  %v563 = vshrl.u32 %v562, 7
  %v564 = vsub.s32 0, %v563
  %v565 = vrot.slane %v185, %v564
  %566 = vmatprep.subr.mxu0 0.0
  %567 = vmatpush1.msra.mxu0 %v150
  %568 = vmatprep.subr.mxu0 0.0
  %569 = vmatpush1.msra.mxu0 %v151
  %570 = vmatprep.subr.mxu0 0.0
  %571 = vmatpush1.msra.mxu0 %v152
  %572 = vmatprep.subr.mxu0 0.0
  %573 = vmatpush1.msra.mxu0 %v153
  %574 = vmatprep.subr.mxu0 0.0
  %575 = vmatpush1.msra.mxu0 %v154
  %576 = vmatprep.subr.mxu0 0.0
  %577 = vmatpush1.msra.mxu0 %v155
  %578 = vmatprep.subr.mxu0 0.0
  %579 = vmatpush1.msra.mxu0 %v156
  %580 = vmatprep.subr.mxu0 0.0
  %581 = vmatpush1.msra.mxu0 %v157
  %582 = vmatprep.subr.mxu0 0.0
  %583 = vmatpush1.msra.mxu0 %v158
  %584 = vmatprep.subr.mxu0 0.0
  %585 = vmatpush1.msra.mxu0 %v159
  %586 = vmatprep.subr.mxu0 0.0
  %587 = vmatpush1.msra.mxu0 %v160
  %588 = vmatprep.subr.mxu0 0.0
  %589 = vmatpush1.msra.mxu0 %v161
  %590 = vmatprep.subr.mxu0 0.0
  %591 = vmatpush1.msra.mxu0 %v162
  %592 = vmatprep.subr.mxu0 0.0
  %593 = vmatpush1.msra.mxu0 %v163
  %594 = vmatprep.subr.mxu0 0.0
  %595 = vmatpush1.msra.mxu0 %v164
  %596 = vmatprep.subr.mxu0 0.0
  %597 = vmatpush1.msra.mxu0 %v165
  %598 = vmatprep.subr.mxu0 0.0
  %599 = vmatpush1.msra.mxu0 0.0
  %600 = vmatprep.subr.mxu0 0.0
  %601 = vmatpush1.msra.mxu0 0.0
  %602 = vmatprep.subr.mxu0 0.0
  %603 = vmatpush1.msra.mxu0 0.0
  %604 = vmatprep.subr.mxu0 0.0
  %605 = vmatpush1.msra.mxu0 0.0
  %606 = vmatprep.subr.mxu0 0.0
  %607 = vmatpush1.msra.mxu0 0.0
  %608 = vmatprep.subr.mxu0 0.0
  %609 = vmatpush1.msra.mxu0 0.0
  %610 = vmatprep.subr.mxu0 0.0
  %611 = vmatpush1.msra.mxu0 0.0
  %612 = vmatprep.subr.mxu0 0.0
  %613 = vmatpush1.msra.mxu0 0.0
  %614 = vmatprep.subr.mxu0 0.0
  %615 = vmatpush1.msra.mxu0 0.0
  %616 = vmatprep.subr.mxu0 0.0
  %617 = vmatpush1.msra.mxu0 0.0
  %618 = vmatprep.subr.mxu0 0.0
  %619 = vmatpush1.msra.mxu0 0.0
  %620 = vmatprep.subr.mxu0 0.0
  %621 = vmatpush1.msra.mxu0 0.0
  %622 = vmatprep.subr.mxu0 0.0
  %623 = vmatpush1.msra.mxu0 0.0
  %624 = vmatprep.subr.mxu0 0.0
  %625 = vmatpush1.msra.mxu0 0.0
  %626 = vmatprep.subr.mxu0 0.0
  %627 = vmatpush1.msra.mxu0 0.0
  %628 = vmatprep.subr.mxu0 0.0
  %629 = vmatpush1.msra.mxu0 0.0
  %630 = vmatprep.mubr.f32.mxu0 0.0
  %631 = vmatmul.mubr.f32.gmra.mrb[0].mxu0 %v554
  %v632 = vpop.f32.mrb[0].mxu0
  %v633 = vadd.f32 %v565, %v632
  %v634 = vpop.f32.mrb[0].mxu0
  %635 = vmatprep.mubr.f32.mxu0 0.0
  %636 = vmatmul.mubr.f32.gmra.mrb[0].mxu0 %v555
  %v637 = vpop.f32.mrb[0].mxu0
  %v638 = vadd.f32 %v565, %v637
  %v639 = vpop.f32.mrb[0].mxu0
  %640 = vmatprep.mubr.f32.mxu0 0.0
  %641 = vmatmul.mubr.f32.gmra.mrb[0].mxu0 %v556
  %v642 = vpop.f32.mrb[0].mxu0
  %v643 = vadd.f32 %v565, %v642
  %v644 = vpop.f32.mrb[0].mxu0
  %645 = vmatprep.mubr.f32.mxu0 0.0
  %646 = vmatmul.mubr.f32.gmra.mrb[0].mxu0 %v557
  %v647 = vpop.f32.mrb[0].mxu0
  %v648 = vadd.f32 %v565, %v647
  %v649 = vpop.f32.mrb[0].mxu0
  %650 = vmatprep.mubr.f32.mxu0 0.0
  %651 = vmatmul.mubr.f32.gmra.mrb[0].mxu0 %v558
  %v652 = vpop.f32.mrb[0].mxu0
  %v653 = vadd.f32 %v565, %v652
  %v654 = vpop.f32.mrb[0].mxu0
  %655 = vmatprep.mubr.f32.mxu0 0.0
  %656 = vmatmul.mubr.f32.gmra.mrb[0].mxu0 %v559
  %v657 = vpop.f32.mrb[0].mxu0
  %v658 = vadd.f32 %v565, %v657
  %v659 = vpop.f32.mrb[0].mxu0
  %660 = vmatprep.mubr.f32.mxu0 0.0
  %661 = vmatmul.mubr.f32.gmra.mrb[0].mxu0 %v560
  %v662 = vpop.f32.mrb[0].mxu0
  %v663 = vadd.f32 %v565, %v662
  %v664 = vpop.f32.mrb[0].mxu0
  %665 = vmatprep.mubr.f32.mxu0 0.0
  %666 = vmatmul.mubr.f32.gmra.mrb[0].mxu0 %v561
  %v667 = vpop.f32.mrb[0].mxu0
  %v668 = vadd.f32 %v565, %v667
  %v669 = vpop.f32.mrb[0].mxu0
  %670 = vdwg.mxu0
  %v671 = vmax.f32 %v633, 0.0
  %v672 = vmax.f32 %v638, 0.0
  %v673 = vmax.f32 %v643, 0.0
  %v674 = vmax.f32 %v648, 0.0
  %v675 = vmax.f32 %v653, 0.0
  %v676 = vmax.f32 %v658, 0.0
  %v677 = vmax.f32 %v663, 0.0
  %v678 = vmax.f32 %v668, 0.0
  %v679 = vlaneseq
  %v680 = vshrl.u32 %v679, 7
  %v681 = vsub.s32 0, %v680
  %v682 = vrot.slane %v186, %v681
  %683 = vmatprep.subr.mxu0 0.0
  %684 = vmatpush1.msra.mxu0 %v166
  %685 = vmatprep.subr.mxu0 0.0
  %686 = vmatpush1.msra.mxu0 %v167
  %687 = vmatprep.subr.mxu0 0.0
  %688 = vmatpush1.msra.mxu0 %v168
  %689 = vmatprep.subr.mxu0 0.0
  %690 = vmatpush1.msra.mxu0 %v169
  %691 = vmatprep.subr.mxu0 0.0
  %692 = vmatpush1.msra.mxu0 %v170
  %693 = vmatprep.subr.mxu0 0.0
  %694 = vmatpush1.msra.mxu0 %v171
  %695 = vmatprep.subr.mxu0 0.0
  %696 = vmatpush1.msra.mxu0 %v172
  %697 = vmatprep.subr.mxu0 0.0
  %698 = vmatpush1.msra.mxu0 %v173
  %699 = vmatprep.subr.mxu0 0.0
  %700 = vmatpush1.msra.mxu0 %v174
  %701 = vmatprep.subr.mxu0 0.0
  %702 = vmatpush1.msra.mxu0 %v175
  %703 = vmatprep.subr.mxu0 0.0
  %704 = vmatpush1.msra.mxu0 %v176
  %705 = vmatprep.subr.mxu0 0.0
  %706 = vmatpush1.msra.mxu0 %v177
  %707 = vmatprep.subr.mxu0 0.0
  %708 = vmatpush1.msra.mxu0 %v178
  %709 = vmatprep.subr.mxu0 0.0
  %710 = vmatpush1.msra.mxu0 %v179
  %711 = vmatprep.subr.mxu0 0.0
  %712 = vmatpush1.msra.mxu0 %v180
  %713 = vmatprep.subr.mxu0 0.0
  %714 = vmatpush1.msra.mxu0 %v181
  %715 = vmatprep.subr.mxu0 0.0
  %716 = vmatpush1.msra.mxu0 0.0
  %717 = vmatprep.subr.mxu0 0.0
  %718 = vmatpush1.msra.mxu0 0.0
  %719 = vmatprep.subr.mxu0 0.0
  %720 = vmatpush1.msra.mxu0 0.0
  %721 = vmatprep.subr.mxu0 0.0
  %722 = vmatpush1.msra.mxu0 0.0
  %723 = vmatprep.subr.mxu0 0.0
  %724 = vmatpush1.msra.mxu0 0.0
  %725 = vmatprep.subr.mxu0 0.0
  %726 = vmatpush1.msra.mxu0 0.0
  %727 = vmatprep.subr.mxu0 0.0
  %728 = vmatpush1.msra.mxu0 0.0
  %729 = vmatprep.subr.mxu0 0.0
  %730 = vmatpush1.msra.mxu0 0.0
  %731 = vmatprep.subr.mxu0 0.0
  %732 = vmatpush1.msra.mxu0 0.0
  %733 = vmatprep.subr.mxu0 0.0
  %734 = vmatpush1.msra.mxu0 0.0
  %735 = vmatprep.subr.mxu0 0.0
  %736 = vmatpush1.msra.mxu0 0.0
  %737 = vmatprep.subr.mxu0 0.0
  %738 = vmatpush1.msra.mxu0 0.0
  %739 = vmatprep.subr.mxu0 0.0
  %740 = vmatpush1.msra.mxu0 0.0
  %741 = vmatprep.subr.mxu0 0.0
  %742 = vmatpush1.msra.mxu0 0.0
  %743 = vmatprep.subr.mxu0 0.0
  %744 = vmatpush1.msra.mxu0 0.0
  %745 = vmatprep.subr.mxu0 0.0
  %746 = vmatpush1.msra.mxu0 0.0
  %747 = vmatprep.mubr.f32.mxu0 0.0
  %748 = vmatmul.mubr.f32.gmra.mrb[0].mxu0 %v671
  %v749 = vpop.f32.mrb[0].mxu0
  %v750 = vadd.f32 %v682, %v749
  %v751 = vpop.f32.mrb[0].mxu0
  %752 = vmatprep.mubr.f32.mxu0 0.0
  %753 = vmatmul.mubr.f32.gmra.mrb[0].mxu0 %v672
  %v754 = vpop.f32.mrb[0].mxu0
  %v755 = vadd.f32 %v682, %v754
  %v756 = vpop.f32.mrb[0].mxu0
  %757 = vmatprep.mubr.f32.mxu0 0.0
  %758 = vmatmul.mubr.f32.gmra.mrb[0].mxu0 %v673
  %v759 = vpop.f32.mrb[0].mxu0
  %v760 = vadd.f32 %v682, %v759
  %v761 = vpop.f32.mrb[0].mxu0
  %762 = vmatprep.mubr.f32.mxu0 0.0
  %763 = vmatmul.mubr.f32.gmra.mrb[0].mxu0 %v674
  %v764 = vpop.f32.mrb[0].mxu0
  %v765 = vadd.f32 %v682, %v764
  %v766 = vpop.f32.mrb[0].mxu0
  %767 = vmatprep.mubr.f32.mxu0 0.0
  %768 = vmatmul.mubr.f32.gmra.mrb[0].mxu0 %v675
  %v769 = vpop.f32.mrb[0].mxu0
  %v770 = vadd.f32 %v682, %v769
  %v771 = vpop.f32.mrb[0].mxu0
  %772 = vmatprep.mubr.f32.mxu0 0.0
  %773 = vmatmul.mubr.f32.gmra.mrb[0].mxu0 %v676
  %v774 = vpop.f32.mrb[0].mxu0
  %v775 = vadd.f32 %v682, %v774
  %v776 = vpop.f32.mrb[0].mxu0
  %777 = vmatprep.mubr.f32.mxu0 0.0
  %778 = vmatmul.mubr.f32.gmra.mrb[0].mxu0 %v677
  %v779 = vpop.f32.mrb[0].mxu0
  %v780 = vadd.f32 %v682, %v779
  %v781 = vpop.f32.mrb[0].mxu0
  %782 = vmatprep.mubr.f32.mxu0 0.0
  %783 = vmatmul.mubr.f32.gmra.mrb[0].mxu0 %v678
  %v784 = vpop.f32.mrb[0].mxu0
  %v785 = vadd.f32 %v682, %v784
  %v786 = vpop.f32.mrb[0].mxu0
  %787 = vdwg.mxu0
  %v788 = vtanh.pop %v750
  %v789 = vtanh.pop %v755
  %v790 = vtanh.pop %v760
  %v791 = vtanh.pop %v765
  %v792 = vtanh.pop %v770
  %v793 = vtanh.pop %v775
  %v794 = vtanh.pop %v780
  %v795 = vtanh.pop %v785
  %796 = vst [vmem:[%s4] sm:$0xff] %v788
  %797 = vst [vmem:[%s4 + $0x8] sm:$0xff] %v789
  %798 = vst [vmem:[%s4 + $0x10] sm:$0xff] %v790
  %799 = vst [vmem:[%s4 + $0x18] sm:$0xff] %v791
  %800 = vst [vmem:[%s4 + $0x20] sm:$0xff] %v792
  %801 = vst [vmem:[%s4 + $0x28] sm:$0xff] %v793
  %802 = vst [vmem:[%s4 + $0x30] sm:$0xff] %v794
  %803 = vst [vmem:[%s4 + $0x38] sm:$0xff] %v795
  // Predicated region
  $region18: #{deep_q_network_forward.1} parent=0 // pred_check
    _
  $region19: #{deep_q_network_forward.1} parent=0 // pred_check_branch
    %805 = sbr.rel (0) target = $region21
  $region20: #{deep_q_network_forward.1} parent=0 // pred_region
    _
  $region21: #{deep_q_network_forward.1} parent=0 // pred_fallthru
    _
  // Predicated region
  $region22: #{deep_q_network_forward.1} parent=0 // pred_check
    _
  $region23: #{deep_q_network_forward.1} parent=0 // pred_check_branch
    %807 = sbr.rel (0) target = $region25
  $region24: #{deep_q_network_forward.1} parent=0 // pred_region
    _
  $region25: #{deep_q_network_forward.1} parent=0 // pred_fallthru
    _

</llo_original>
